<compile_context>
chip_gen: v5e
topology: v5e:2x2
jax: 0.10.0
libtpu: 0.0.40
codegen_flags: <defaults>
</compile_context>

<pallas_src>
import math

import jax
import jax.numpy as jnp
from jax import lax
from jax.experimental import pallas as pl
from jax.experimental.pallas import tpu as pltpu


def _gaussian_1d(kernel_size: int, sigma: float) -> jnp.ndarray:
    """1-D Gaussian taps, normalized so the separable 2-D product sums to 1.

    The PyTorch module builds kernel2d = outer(g, g) / sum(outer(g, g)); with
    gn = g / sum(g) that is exactly outer(gn, gn), so two 1-D passes with gn
    reproduce the module's depthwise 2-D filter.
    """
    coords = jnp.arange(kernel_size, dtype=jnp.float32)
    mean = (kernel_size - 1) / 2.0
    g = (1.0 / (sigma * math.sqrt(2.0 * math.pi))) * jnp.exp(
        -(((coords - mean) / sigma) ** 2) / 2.0
    )
    return g / jnp.sum(g)


def gaussian_smoothing(x: jnp.ndarray, g: jnp.ndarray) -> jnp.ndarray:
    """x: (N, C, H, W) float32; g: (K,) normalized 1-D gaussian taps (shared by all
    channels, exactly as the module repeats the same kernel per channel)."""
    N, C, H, W = x.shape
    K = int(g.shape[0])
    Ho, Wo = H - K + 1, W - K + 1
    NC = N * C

    # Fold N*C so a whole stack of planes is processed per grid step.
    x2 = x.reshape(NC, H, W)

    # Tile the folded plane axis so each block (x2 for Pallas double-buffering)
    # stays comfortably inside scoped VMEM (conservative also for v7x's 64 MiB).
    plane_bytes = H * W * x.dtype.itemsize
    tb = max(1, min(NC, (8 * 1024 * 1024) // max(1, plane_bytes)))
    while NC % tb != 0:
        tb -= 1

    def kernel(g_ref, x_ref, o_ref):
        # g_ref: SMEM (K,) f32 taps; x_ref: VMEM (tb, H, W); o_ref: VMEM (tb, Ho, Wo).
        x_t = x_ref[...].astype(jnp.float32)

        # Separable filter. Horizontal 1-D pass (K taps) over the lane axis ...
        tmp = g_ref[0] * x_t[:, :, 0:Wo]
        for j in range(1, K):
            tmp = tmp + g_ref[j] * x_t[:, :, j:j + Wo]

        # ... then vertical 1-D pass (K taps) over the sublane axis.
        acc = g_ref[0] * tmp[:, 0:Ho, :]
        for i in range(1, K):
            acc = acc + g_ref[i] * tmp[:, i:i + Ho, :]

        o_ref[...] = acc.astype(o_ref.dtype)

    # TODO(synk): at this toy W=16 the output last dim (Wo=12) cannot be made a
    # multiple of 128 without zero-padding; for realistic images tile W in
    # multiples of 128 for lane-dense (unmasked) stores.
    out = pl.pallas_call(
        kernel,
        out_shape=jax.ShapeDtypeStruct((NC, Ho, Wo), x.dtype),
        grid=(NC // tb,),
        in_specs=[
            pl.BlockSpec(memory_space=pltpu.MemorySpace.SMEM),  # taps resident in SMEM
            pl.BlockSpec((tb, H, W), lambda b: (b, 0, 0)),
        ],
        out_specs=pl.BlockSpec((tb, Ho, Wo), lambda b: (b, 0, 0)),
        compiler_params=pltpu.CompilerParams(
            dimension_semantics=("parallel",),
        ),
    )(g, x2)
    return out.reshape(N, C, Ho, Wo)


if __name__ == "__main__":
    # Module config: channels=4, kernel_size=5, sigma=1.0, dim=2
    N, C, H, W = 2, 4, 16, 16
    K, SIGMA = 5, 1.0

    key = jax.random.PRNGKey(0)
    x = jax.random.normal(key, (N, C, H, W), dtype=jnp.float32)

    # Deterministic "buffer" init, same construction as the module's __init__.
    g = _gaussian_1d(K, SIGMA)  # (K,), separable normalized taps

    out = gaussian_smoothing(x, g)
    out = jax.block_until_ready(out)

    # Reference: XLA depthwise conv with the module's 2-D weight = outer(g, g) per channel.
    k2 = g[:, None] * g[None, :]
    weight = jnp.broadcast_to(k2[None, None, :, :], (C, 1, K, K))  # OIHW, I=1
    ref = lax.conv_general_dilated(
        x,
        weight,
        window_strides=(1, 1),
        padding="VALID",
        dimension_numbers=("NCHW", "OIHW", "NCHW"),
        feature_group_count=C,
    )
    assert out.shape == (N, C, H - K + 1, W - K + 1)
    assert jnp.allclose(out, ref, atol=1e-5, rtol=1e-5)

    print("KERNEL_OK")
</pallas_src>

<mosaic_0001>
module attributes {stable_mosaic.version = 11 : i64} {
  func.func @kernel(%arg0: i32, %arg1: memref<5xf32, #tpu.memory_space<smem>>, %arg2: memref<8x16x16xf32, #tpu.memory_space<vmem>>, %arg3: memref<8x12x12xf32, #tpu.memory_space<vmem>>) attributes {dimension_semantics = [#tpu.dimension_semantics<parallel>], iteration_bounds = array<i64: 1>, scalar_prefetch = 0 : i64, scratch_operands = 0 : i64, tpu.core_type = #tpu.core_type<tc>, window_params = [{transform_indices = @transform_0, window_bounds = array<i64: 5>}, {transform_indices = @transform_1, window_bounds = array<i64: 8, 16, 16>}, {transform_indices = @transform_2, window_bounds = array<i64: 8, 12, 12>}]} {
    %c0 = arith.constant 0 : index
    %c0_0 = arith.constant 0 : index
    %c0_1 = arith.constant 0 : index
    %0 = vector.load %arg2[%c0, %c0_0, %c0_1] : memref<8x16x16xf32, #tpu.memory_space<vmem>>, vector<8x16x16xf32>
    %c0_2 = arith.constant 0 : index
    %1 = memref.load %arg1[%c0_2] : memref<5xf32, #tpu.memory_space<smem>>
    %2 = vector.extract_strided_slice %0 {offsets = [0, 0, 0], sizes = [8, 16, 12], strides = [1, 1, 1]} : vector<8x16x16xf32> to vector<8x16x12xf32>
    %3 = vector.broadcast %1 : f32 to vector<8x16x12xf32>
    %4 = arith.mulf %3, %2 : vector<8x16x12xf32>
    %c1 = arith.constant 1 : index
    %5 = memref.load %arg1[%c1] : memref<5xf32, #tpu.memory_space<smem>>
    %6 = vector.extract_strided_slice %0 {offsets = [0, 0, 1], sizes = [8, 16, 12], strides = [1, 1, 1]} : vector<8x16x16xf32> to vector<8x16x12xf32>
    %7 = vector.broadcast %5 : f32 to vector<8x16x12xf32>
    %8 = arith.mulf %7, %6 : vector<8x16x12xf32>
    %9 = arith.addf %4, %8 : vector<8x16x12xf32>
    %c2 = arith.constant 2 : index
    %10 = memref.load %arg1[%c2] : memref<5xf32, #tpu.memory_space<smem>>
    %11 = vector.extract_strided_slice %0 {offsets = [0, 0, 2], sizes = [8, 16, 12], strides = [1, 1, 1]} : vector<8x16x16xf32> to vector<8x16x12xf32>
    %12 = vector.broadcast %10 : f32 to vector<8x16x12xf32>
    %13 = arith.mulf %12, %11 : vector<8x16x12xf32>
    %14 = arith.addf %9, %13 : vector<8x16x12xf32>
    %c3 = arith.constant 3 : index
    %15 = memref.load %arg1[%c3] : memref<5xf32, #tpu.memory_space<smem>>
    %16 = vector.extract_strided_slice %0 {offsets = [0, 0, 3], sizes = [8, 16, 12], strides = [1, 1, 1]} : vector<8x16x16xf32> to vector<8x16x12xf32>
    %17 = vector.broadcast %15 : f32 to vector<8x16x12xf32>
    %18 = arith.mulf %17, %16 : vector<8x16x12xf32>
    %19 = arith.addf %14, %18 : vector<8x16x12xf32>
    %c4 = arith.constant 4 : index
    %20 = memref.load %arg1[%c4] : memref<5xf32, #tpu.memory_space<smem>>
    %21 = vector.extract_strided_slice %0 {offsets = [0, 0, 4], sizes = [8, 16, 12], strides = [1, 1, 1]} : vector<8x16x16xf32> to vector<8x16x12xf32>
    %22 = vector.broadcast %20 : f32 to vector<8x16x12xf32>
    %23 = arith.mulf %22, %21 : vector<8x16x12xf32>
    %24 = arith.addf %19, %23 : vector<8x16x12xf32>
    %c0_3 = arith.constant 0 : index
    %25 = memref.load %arg1[%c0_3] : memref<5xf32, #tpu.memory_space<smem>>
    %26 = vector.extract_strided_slice %24 {offsets = [0, 0, 0], sizes = [8, 12, 12], strides = [1, 1, 1]} : vector<8x16x12xf32> to vector<8x12x12xf32>
    %27 = vector.broadcast %25 : f32 to vector<8x12x12xf32>
    %28 = arith.mulf %27, %26 : vector<8x12x12xf32>
    %c1_4 = arith.constant 1 : index
    %29 = memref.load %arg1[%c1_4] : memref<5xf32, #tpu.memory_space<smem>>
    %30 = vector.extract_strided_slice %24 {offsets = [0, 1, 0], sizes = [8, 12, 12], strides = [1, 1, 1]} : vector<8x16x12xf32> to vector<8x12x12xf32>
    %31 = vector.broadcast %29 : f32 to vector<8x12x12xf32>
    %32 = arith.mulf %31, %30 : vector<8x12x12xf32>
    %33 = arith.addf %28, %32 : vector<8x12x12xf32>
    %c2_5 = arith.constant 2 : index
    %34 = memref.load %arg1[%c2_5] : memref<5xf32, #tpu.memory_space<smem>>
    %35 = vector.extract_strided_slice %24 {offsets = [0, 2, 0], sizes = [8, 12, 12], strides = [1, 1, 1]} : vector<8x16x12xf32> to vector<8x12x12xf32>
    %36 = vector.broadcast %34 : f32 to vector<8x12x12xf32>
    %37 = arith.mulf %36, %35 : vector<8x12x12xf32>
    %38 = arith.addf %33, %37 : vector<8x12x12xf32>
    %c3_6 = arith.constant 3 : index
    %39 = memref.load %arg1[%c3_6] : memref<5xf32, #tpu.memory_space<smem>>
    %40 = vector.extract_strided_slice %24 {offsets = [0, 3, 0], sizes = [8, 12, 12], strides = [1, 1, 1]} : vector<8x16x12xf32> to vector<8x12x12xf32>
    %41 = vector.broadcast %39 : f32 to vector<8x12x12xf32>
    %42 = arith.mulf %41, %40 : vector<8x12x12xf32>
    %43 = arith.addf %38, %42 : vector<8x12x12xf32>
    %c4_7 = arith.constant 4 : index
    %44 = memref.load %arg1[%c4_7] : memref<5xf32, #tpu.memory_space<smem>>
    %45 = vector.extract_strided_slice %24 {offsets = [0, 4, 0], sizes = [8, 12, 12], strides = [1, 1, 1]} : vector<8x16x12xf32> to vector<8x12x12xf32>
    %46 = vector.broadcast %44 : f32 to vector<8x12x12xf32>
    %47 = arith.mulf %46, %45 : vector<8x12x12xf32>
    %48 = arith.addf %43, %47 : vector<8x12x12xf32>
    %c0_8 = arith.constant 0 : index
    %c0_9 = arith.constant 0 : index
    %c0_10 = arith.constant 0 : index
    %49 = vector.load %arg3[%c0_8, %c0_9, %c0_10] : memref<8x12x12xf32, #tpu.memory_space<vmem>>, vector<8x12x12xf32>
    tpu.vector_store %arg3[%c0_8, %c0_9, %c0_10], %48 {strides = array<i32>} : memref<8x12x12xf32, #tpu.memory_space<vmem>>, vector<8x12x12xf32>,
    return
  }
  func.func @transform_0(%arg0: i32) -> i32 {
    %c0_i32 = arith.constant 0 : i32
    %c0_i32_0 = arith.constant 0 : i32
    return %c0_i32 : i32
  }
  func.func @transform_1(%arg0: i32) -> (i32, i32, i32) {
    %c0_i32 = arith.constant 0 : i32
    %c0_i32_0 = arith.constant 0 : i32
    %c0_i32_1 = arith.constant 0 : i32
    return %arg0, %c0_i32, %c0_i32_0 : i32, i32, i32
  }
  func.func @transform_2(%arg0: i32) -> (i32, i32, i32) {
    %c0_i32 = arith.constant 0 : i32
    %c0_i32_0 = arith.constant 0 : i32
    %c0_i32_1 = arith.constant 0 : i32
    return %arg0, %c0_i32, %c0_i32_0 : i32, i32, i32
  }
}

</mosaic_0001>

<llo_original>
// kernel: tpu_custom_call.1
$region0: #{tpu_custom_call.1}
  #allocation0 [shape = 'u32[]', space=smem, size = 0x4, offset = 0x4, fixed_abs, tag = 'smem constant byte address 0x4 - core index']
  #allocation1 [shape = 'u32[72,128]{1,0:T(1,128)}', space=vmem, size = 0x9000, scoped, tag = 'internal scratch']
  %s0 = inlined_call_operand.hbm [shape: f32[5], index: 0, kind: input, shape index: {}]
  %s1 = inlined_call_operand.hbm [shape: f32[8,16,16], index: 1, kind: input, shape index: {}]
  %s2 = inlined_call_operand.vmem [shape: f32[8,12,12], index: 2, kind: output, shape index: {}]
  %s3 = sld [smem:[#allocation0]]
  $region26: #{tpu_custom_call.1} parent=0
    _
  %s5 = ssub.s32 1, %s3
  %s6 = scalar_select 0, %s5, %s3
  $region1: #{tpu_custom_call.1} parent=0
    #allocation2 [shape = 'u8[512]{0}', space=smem, size = 0x200, scoped, tag = 'input window, operand 0, single buffered']
    #allocation3 [shape = 's32[1]{0}', space=sflag, size = 0x4, scoped, tag = 'scoped memory for tpu_custom_call.1']
    #allocation4 [shape = 's32[1]{0}', space=sflag, size = 0x4, scoped, tag = 'scoped memory for tpu_custom_call.1']
    #allocation5 [shape = 'u8[65536]{0}', space=vmem, size = 0x10000, scoped, tag = 'input window, operand 1, single buffered']
    %7 = vsyncpa [#allocation4], 0
    %8 = vsyncpa [#allocation3], 0
    // Predicated region
    $region2: #{tpu_custom_call.1} parent=1 // pred_check
      _
    $region3: #{tpu_custom_call.1} parent=1 // pred_check_branch
      %10 = sbr.rel (0) target = $region5
    $region4: #{tpu_custom_call.1} parent=1 // pred_region
      %12 = vsyncadd [#allocation4], 0
      %s14 = sshll.u32 %s0, 4
      %s15 = int_to_ptr.hbm [resolvable:$true] %s14
      %17 = dma.hbm_to_smem %s15, 16, [#allocation2], [#allocation4]
    $region5: #{tpu_custom_call.1} parent=1 // pred_fallthru
      _
    // Predicated region
    $region6: #{tpu_custom_call.1} parent=1 // pred_check
      _
    $region7: #{tpu_custom_call.1} parent=1 // pred_check_branch
      %19 = sbr.rel (0) target = $region9
    $region8: #{tpu_custom_call.1} parent=1 // pred_region
      %21 = vsyncadd [#allocation3], 0
      %s22 = sshll.u32 %s1, 4
      %s23 = int_to_ptr.hbm [resolvable:$true] %s22
      %s24 = sshll.u32 [#allocation5], 4
      %s25 = int_to_ptr.vmem [resolvable:$true] %s24
      %30 = dma.hbm_to_vmem [thread:$0]  %s23, 2048, %s25, [#allocation3], 128, 128, 8
    $region9: #{tpu_custom_call.1} parent=1 // pred_fallthru
      _
    // Predicated region
    $region10: #{tpu_custom_call.1} parent=1 // pred_check
      _
    $region11: #{tpu_custom_call.1} parent=1 // pred_check_branch
      %32 = sbr.rel (0) target = $region13
    $region12: #{tpu_custom_call.1} parent=1 // pred_region
      %34 = dma.done [#allocation4], 16
    $region13: #{tpu_custom_call.1} parent=1 // pred_fallthru
      _
    // Predicated region
    $region14: #{tpu_custom_call.1} parent=1 // pred_check
      _
    $region15: #{tpu_custom_call.1} parent=1 // pred_check_branch
      %36 = sbr.rel (0) target = $region17
    $region16: #{tpu_custom_call.1} parent=1 // pred_region
      %38 = dma.done [#allocation3], 2048
    $region17: #{tpu_custom_call.1} parent=1 // pred_fallthru
      _
    %39 = sfence
    %v40 = vld [vmem:[#allocation5] sm:$0xff]
    %v41 = vld [vmem:[#allocation5 + $0x8] sm:$0xff]
    %v42 = vld [vmem:[#allocation5 + $0x10] sm:$0xff]
    %v43 = vld [vmem:[#allocation5 + $0x18] sm:$0xff]
    %v44 = vld [vmem:[#allocation5 + $0x20] sm:$0xff]
    %v45 = vld [vmem:[#allocation5 + $0x28] sm:$0xff]
    %v46 = vld [vmem:[#allocation5 + $0x30] sm:$0xff]
    %v47 = vld [vmem:[#allocation5 + $0x38] sm:$0xff]
    %v48 = vld [vmem:[#allocation5 + $0x40] sm:$0xff]
    %v49 = vld [vmem:[#allocation5 + $0x48] sm:$0xff]
    %v50 = vld [vmem:[#allocation5 + $0x50] sm:$0xff]
    %v51 = vld [vmem:[#allocation5 + $0x58] sm:$0xff]
    %v52 = vld [vmem:[#allocation5 + $0x60] sm:$0xff]
    %v53 = vld [vmem:[#allocation5 + $0x68] sm:$0xff]
    %v54 = vld [vmem:[#allocation5 + $0x70] sm:$0xff]
    %v55 = vld [vmem:[#allocation5 + $0x78] sm:$0xff]
    %s56 = sld [smem:[#allocation2]]
    %v57 = vstv %s56
    %v58 = vmul.f32 %v57, %v40
    %v59 = vmul.f32 %v57, %v41
    %v60 = vmul.f32 %v57, %v42
    %v61 = vmul.f32 %v57, %v43
    %v62 = vmul.f32 %v57, %v44
    %v63 = vmul.f32 %v57, %v45
    %v64 = vmul.f32 %v57, %v46
    %v65 = vmul.f32 %v57, %v47
    %v66 = vmul.f32 %v57, %v48
    %v67 = vmul.f32 %v57, %v49
    %v68 = vmul.f32 %v57, %v50
    %v69 = vmul.f32 %v57, %v51
    %v70 = vmul.f32 %v57, %v52
    %v71 = vmul.f32 %v57, %v53
    %v72 = vmul.f32 %v57, %v54
    %v73 = vmul.f32 %v57, %v55
    %s74 = sld [smem:[#allocation2 + $0x1]]
    %v75 = vstv %s74
    %v76 = vmul.f32 %v75, %v40
    %v77 = vmul.f32 %v75, %v41
    %v78 = vmul.f32 %v75, %v42
    %v79 = vmul.f32 %v75, %v43
    %v80 = vmul.f32 %v75, %v44
    %v81 = vmul.f32 %v75, %v45
    %v82 = vmul.f32 %v75, %v46
    %v83 = vmul.f32 %v75, %v47
    %v84 = vmul.f32 %v75, %v48
    %v85 = vmul.f32 %v75, %v49
    %v86 = vmul.f32 %v75, %v50
    %v87 = vmul.f32 %v75, %v51
    %v88 = vmul.f32 %v75, %v52
    %v89 = vmul.f32 %v75, %v53
    %v90 = vmul.f32 %v75, %v54
    %v91 = vmul.f32 %v75, %v55
    %108 = vrot.lane.b32.xlu0 %v76, 127
    %v109 = vpop.permute.xlu0 %108
    %110 = vrot.lane.b32.xlu0 %v77, 127
    %v111 = vpop.permute.xlu0 %110
    %112 = vrot.lane.b32.xlu0 %v78, 127
    %v113 = vpop.permute.xlu0 %112
    %114 = vrot.lane.b32.xlu0 %v79, 127
    %v115 = vpop.permute.xlu0 %114
    %116 = vrot.lane.b32.xlu0 %v80, 127
    %v117 = vpop.permute.xlu0 %116
    %118 = vrot.lane.b32.xlu0 %v81, 127
    %v119 = vpop.permute.xlu0 %118
    %120 = vrot.lane.b32.xlu0 %v82, 127
    %v121 = vpop.permute.xlu0 %120
    %122 = vrot.lane.b32.xlu0 %v83, 127
    %v123 = vpop.permute.xlu0 %122
    %124 = vrot.lane.b32.xlu0 %v84, 127
    %v125 = vpop.permute.xlu0 %124
    %126 = vrot.lane.b32.xlu0 %v85, 127
    %v127 = vpop.permute.xlu0 %126
    %128 = vrot.lane.b32.xlu0 %v86, 127
    %v129 = vpop.permute.xlu0 %128
    %130 = vrot.lane.b32.xlu0 %v87, 127
    %v131 = vpop.permute.xlu0 %130
    %132 = vrot.lane.b32.xlu0 %v88, 127
    %v133 = vpop.permute.xlu0 %132
    %134 = vrot.lane.b32.xlu0 %v89, 127
    %v135 = vpop.permute.xlu0 %134
    %136 = vrot.lane.b32.xlu0 %v90, 127
    %v137 = vpop.permute.xlu0 %136
    %138 = vrot.lane.b32.xlu0 %v91, 127
    %v139 = vpop.permute.xlu0 %138
    %v156 = vadd.f32 %v58, %v109
    %v157 = vadd.f32 %v59, %v111
    %v158 = vadd.f32 %v60, %v113
    %v159 = vadd.f32 %v61, %v115
    %v160 = vadd.f32 %v62, %v117
    %v161 = vadd.f32 %v63, %v119
    %v162 = vadd.f32 %v64, %v121
    %v163 = vadd.f32 %v65, %v123
    %v164 = vadd.f32 %v66, %v125
    %v165 = vadd.f32 %v67, %v127
    %v166 = vadd.f32 %v68, %v129
    %v167 = vadd.f32 %v69, %v131
    %v168 = vadd.f32 %v70, %v133
    %v169 = vadd.f32 %v71, %v135
    %v170 = vadd.f32 %v72, %v137
    %v171 = vadd.f32 %v73, %v139
    %s172 = sld [smem:[#allocation2 + $0x2]]
    %v173 = vstv %s172
    %v174 = vmul.f32 %v173, %v40
    %v175 = vmul.f32 %v173, %v41
    %v176 = vmul.f32 %v173, %v42
    %v177 = vmul.f32 %v173, %v43
    %v178 = vmul.f32 %v173, %v44
    %v179 = vmul.f32 %v173, %v45
    %v180 = vmul.f32 %v173, %v46
    %v181 = vmul.f32 %v173, %v47
    %v182 = vmul.f32 %v173, %v48
    %v183 = vmul.f32 %v173, %v49
    %v184 = vmul.f32 %v173, %v50
    %v185 = vmul.f32 %v173, %v51
    %v186 = vmul.f32 %v173, %v52
    %v187 = vmul.f32 %v173, %v53
    %v188 = vmul.f32 %v173, %v54
    %v189 = vmul.f32 %v173, %v55
    %206 = vrot.lane.b32.xlu0 %v174, 126
    %v207 = vpop.permute.xlu0 %206
    %208 = vrot.lane.b32.xlu0 %v175, 126
    %v209 = vpop.permute.xlu0 %208
    %210 = vrot.lane.b32.xlu0 %v176, 126
    %v211 = vpop.permute.xlu0 %210
    %212 = vrot.lane.b32.xlu0 %v177, 126
    %v213 = vpop.permute.xlu0 %212
    %214 = vrot.lane.b32.xlu0 %v178, 126
    %v215 = vpop.permute.xlu0 %214
    %216 = vrot.lane.b32.xlu0 %v179, 126
    %v217 = vpop.permute.xlu0 %216
    %218 = vrot.lane.b32.xlu0 %v180, 126
    %v219 = vpop.permute.xlu0 %218
    %220 = vrot.lane.b32.xlu0 %v181, 126
    %v221 = vpop.permute.xlu0 %220
    %222 = vrot.lane.b32.xlu0 %v182, 126
    %v223 = vpop.permute.xlu0 %222
    %224 = vrot.lane.b32.xlu0 %v183, 126
    %v225 = vpop.permute.xlu0 %224
    %226 = vrot.lane.b32.xlu0 %v184, 126
    %v227 = vpop.permute.xlu0 %226
    %228 = vrot.lane.b32.xlu0 %v185, 126
    %v229 = vpop.permute.xlu0 %228
    %230 = vrot.lane.b32.xlu0 %v186, 126
    %v231 = vpop.permute.xlu0 %230
    %232 = vrot.lane.b32.xlu0 %v187, 126
    %v233 = vpop.permute.xlu0 %232
    %234 = vrot.lane.b32.xlu0 %v188, 126
    %v235 = vpop.permute.xlu0 %234
    %236 = vrot.lane.b32.xlu0 %v189, 126
    %v237 = vpop.permute.xlu0 %236
    %v254 = vadd.f32 %v156, %v207
    %v255 = vadd.f32 %v157, %v209
    %v256 = vadd.f32 %v158, %v211
    %v257 = vadd.f32 %v159, %v213
    %v258 = vadd.f32 %v160, %v215
    %v259 = vadd.f32 %v161, %v217
    %v260 = vadd.f32 %v162, %v219
    %v261 = vadd.f32 %v163, %v221
    %v262 = vadd.f32 %v164, %v223
    %v263 = vadd.f32 %v165, %v225
    %v264 = vadd.f32 %v166, %v227
    %v265 = vadd.f32 %v167, %v229
    %v266 = vadd.f32 %v168, %v231
    %v267 = vadd.f32 %v169, %v233
    %v268 = vadd.f32 %v170, %v235
    %v269 = vadd.f32 %v171, %v237
    %s270 = sld [smem:[#allocation2 + $0x3]]
    %v271 = vstv %s270
    %v272 = vmul.f32 %v271, %v40
    %v273 = vmul.f32 %v271, %v41
    %v274 = vmul.f32 %v271, %v42
    %v275 = vmul.f32 %v271, %v43
    %v276 = vmul.f32 %v271, %v44
    %v277 = vmul.f32 %v271, %v45
    %v278 = vmul.f32 %v271, %v46
    %v279 = vmul.f32 %v271, %v47
    %v280 = vmul.f32 %v271, %v48
    %v281 = vmul.f32 %v271, %v49
    %v282 = vmul.f32 %v271, %v50
    %v283 = vmul.f32 %v271, %v51
    %v284 = vmul.f32 %v271, %v52
    %v285 = vmul.f32 %v271, %v53
    %v286 = vmul.f32 %v271, %v54
    %v287 = vmul.f32 %v271, %v55
    %304 = vrot.lane.b32.xlu0 %v272, 125
    %v305 = vpop.permute.xlu0 %304
    %306 = vrot.lane.b32.xlu0 %v273, 125
    %v307 = vpop.permute.xlu0 %306
    %308 = vrot.lane.b32.xlu0 %v274, 125
    %v309 = vpop.permute.xlu0 %308
    %310 = vrot.lane.b32.xlu0 %v275, 125
    %v311 = vpop.permute.xlu0 %310
    %312 = vrot.lane.b32.xlu0 %v276, 125
    %v313 = vpop.permute.xlu0 %312
    %314 = vrot.lane.b32.xlu0 %v277, 125
    %v315 = vpop.permute.xlu0 %314
    %316 = vrot.lane.b32.xlu0 %v278, 125
    %v317 = vpop.permute.xlu0 %316
    %318 = vrot.lane.b32.xlu0 %v279, 125
    %v319 = vpop.permute.xlu0 %318
    %320 = vrot.lane.b32.xlu0 %v280, 125
    %v321 = vpop.permute.xlu0 %320
    %322 = vrot.lane.b32.xlu0 %v281, 125
    %v323 = vpop.permute.xlu0 %322
    %324 = vrot.lane.b32.xlu0 %v282, 125
    %v325 = vpop.permute.xlu0 %324
    %326 = vrot.lane.b32.xlu0 %v283, 125
    %v327 = vpop.permute.xlu0 %326
    %328 = vrot.lane.b32.xlu0 %v284, 125
    %v329 = vpop.permute.xlu0 %328
    %330 = vrot.lane.b32.xlu0 %v285, 125
    %v331 = vpop.permute.xlu0 %330
    %332 = vrot.lane.b32.xlu0 %v286, 125
    %v333 = vpop.permute.xlu0 %332
    %334 = vrot.lane.b32.xlu0 %v287, 125
    %v335 = vpop.permute.xlu0 %334
    %v352 = vadd.f32 %v254, %v305
    %v353 = vadd.f32 %v255, %v307
    %v354 = vadd.f32 %v256, %v309
    %v355 = vadd.f32 %v257, %v311
    %v356 = vadd.f32 %v258, %v313
    %v357 = vadd.f32 %v259, %v315
    %v358 = vadd.f32 %v260, %v317
    %v359 = vadd.f32 %v261, %v319
    %v360 = vadd.f32 %v262, %v321
    %v361 = vadd.f32 %v263, %v323
    %v362 = vadd.f32 %v264, %v325
    %v363 = vadd.f32 %v265, %v327
    %v364 = vadd.f32 %v266, %v329
    %v365 = vadd.f32 %v267, %v331
    %v366 = vadd.f32 %v268, %v333
    %v367 = vadd.f32 %v269, %v335
    %s368 = sld [smem:[#allocation2 + $0x4]]
    %v369 = vstv %s368
    %v370 = vmul.f32 %v369, %v40
    %v371 = vmul.f32 %v369, %v41
    %v372 = vmul.f32 %v369, %v42
    %v373 = vmul.f32 %v369, %v43
    %v374 = vmul.f32 %v369, %v44
    %v375 = vmul.f32 %v369, %v45
    %v376 = vmul.f32 %v369, %v46
    %v377 = vmul.f32 %v369, %v47
    %v378 = vmul.f32 %v369, %v48
    %v379 = vmul.f32 %v369, %v49
    %v380 = vmul.f32 %v369, %v50
    %v381 = vmul.f32 %v369, %v51
    %v382 = vmul.f32 %v369, %v52
    %v383 = vmul.f32 %v369, %v53
    %v384 = vmul.f32 %v369, %v54
    %v385 = vmul.f32 %v369, %v55
    %402 = vrot.lane.b32.xlu0 %v370, 124
    %v403 = vpop.permute.xlu0 %402
    %404 = vrot.lane.b32.xlu0 %v371, 124
    %v405 = vpop.permute.xlu0 %404
    %406 = vrot.lane.b32.xlu0 %v372, 124
    %v407 = vpop.permute.xlu0 %406
    %408 = vrot.lane.b32.xlu0 %v373, 124
    %v409 = vpop.permute.xlu0 %408
    %410 = vrot.lane.b32.xlu0 %v374, 124
    %v411 = vpop.permute.xlu0 %410
    %412 = vrot.lane.b32.xlu0 %v375, 124
    %v413 = vpop.permute.xlu0 %412
    %414 = vrot.lane.b32.xlu0 %v376, 124
    %v415 = vpop.permute.xlu0 %414
    %416 = vrot.lane.b32.xlu0 %v377, 124
    %v417 = vpop.permute.xlu0 %416
    %418 = vrot.lane.b32.xlu0 %v378, 124
    %v419 = vpop.permute.xlu0 %418
    %420 = vrot.lane.b32.xlu0 %v379, 124
    %v421 = vpop.permute.xlu0 %420
    %422 = vrot.lane.b32.xlu0 %v380, 124
    %v423 = vpop.permute.xlu0 %422
    %424 = vrot.lane.b32.xlu0 %v381, 124
    %v425 = vpop.permute.xlu0 %424
    %426 = vrot.lane.b32.xlu0 %v382, 124
    %v427 = vpop.permute.xlu0 %426
    %428 = vrot.lane.b32.xlu0 %v383, 124
    %v429 = vpop.permute.xlu0 %428
    %430 = vrot.lane.b32.xlu0 %v384, 124
    %v431 = vpop.permute.xlu0 %430
    %432 = vrot.lane.b32.xlu0 %v385, 124
    %v433 = vpop.permute.xlu0 %432
    %v450 = vadd.f32 %v352, %v403
    %v451 = vadd.f32 %v353, %v405
    %v452 = vadd.f32 %v354, %v407
    %v453 = vadd.f32 %v355, %v409
    %v454 = vadd.f32 %v356, %v411
    %v455 = vadd.f32 %v357, %v413
    %v456 = vadd.f32 %v358, %v415
    %v457 = vadd.f32 %v359, %v417
    %v458 = vadd.f32 %v360, %v419
    %v459 = vadd.f32 %v361, %v421
    %v460 = vadd.f32 %v362, %v423
    %v461 = vadd.f32 %v363, %v425
    %v462 = vadd.f32 %v364, %v427
    %v463 = vadd.f32 %v365, %v429
    %v464 = vadd.f32 %v366, %v431
    %v465 = vadd.f32 %v367, %v433
    %v466 = vmul.f32 %v57, %v450
    %v467 = vmul.f32 %v57, %v451
    %v468 = vmul.f32 %v57, %v452
    %v469 = vmul.f32 %v57, %v453
    %v470 = vmul.f32 %v57, %v454
    %v471 = vmul.f32 %v57, %v455
    %v472 = vmul.f32 %v57, %v456
    %v473 = vmul.f32 %v57, %v457
    %v474 = vmul.f32 %v57, %v458
    %v475 = vmul.f32 %v57, %v459
    %v476 = vmul.f32 %v57, %v460
    %v477 = vmul.f32 %v57, %v461
    %v478 = vmul.f32 %v57, %v462
    %v479 = vmul.f32 %v57, %v463
    %v480 = vmul.f32 %v57, %v464
    %v481 = vmul.f32 %v57, %v465
    %v482 = vmul.f32 %v75, %v450
    %v483 = vmul.f32 %v75, %v451
    %v484 = vmul.f32 %v75, %v452
    %v485 = vmul.f32 %v75, %v453
    %v486 = vmul.f32 %v75, %v454
    %v487 = vmul.f32 %v75, %v455
    %v488 = vmul.f32 %v75, %v456
    %v489 = vmul.f32 %v75, %v457
    %v490 = vmul.f32 %v75, %v458
    %v491 = vmul.f32 %v75, %v459
    %v492 = vmul.f32 %v75, %v460
    %v493 = vmul.f32 %v75, %v461
    %v494 = vmul.f32 %v75, %v462
    %v495 = vmul.f32 %v75, %v463
    %v496 = vmul.f32 %v75, %v464
    %v497 = vmul.f32 %v75, %v465
    %vm514 = vcmask 1046528
    %v515 = vrot.slane %v482, 1
    %v516 = vrot.slane %v483, 1
    %v517 = vsel %vm514, %v515, %v516
    %v518 = vrot.slane %v484, 1
    %v519 = vrot.slane %v485, 1
    %v520 = vsel %vm514, %v518, %v519
    %v521 = vrot.slane %v486, 1
    %v522 = vrot.slane %v487, 1
    %v523 = vsel %vm514, %v521, %v522
    %v524 = vrot.slane %v488, 1
    %v525 = vrot.slane %v489, 1
    %v526 = vsel %vm514, %v524, %v525
    %v527 = vrot.slane %v490, 1
    %v528 = vrot.slane %v491, 1
    %v529 = vsel %vm514, %v527, %v528
    %v530 = vrot.slane %v492, 1
    %v531 = vrot.slane %v493, 1
    %v532 = vsel %vm514, %v530, %v531
    %v533 = vrot.slane %v494, 1
    %v534 = vrot.slane %v495, 1
    %v535 = vsel %vm514, %v533, %v534
    %v536 = vrot.slane %v496, 1
    %v537 = vrot.slane %v497, 1
    %v538 = vsel %vm514, %v536, %v537
    %v555 = vadd.f32 %v466, %v517
    %v556 = vadd.f32 %v467, %v516
    %v557 = vadd.f32 %v468, %v520
    %v558 = vadd.f32 %v469, %v519
    %v559 = vadd.f32 %v470, %v523
    %v560 = vadd.f32 %v471, %v522
    %v561 = vadd.f32 %v472, %v526
    %v562 = vadd.f32 %v473, %v525
    %v563 = vadd.f32 %v474, %v529
    %v564 = vadd.f32 %v475, %v528
    %v565 = vadd.f32 %v476, %v532
    %v566 = vadd.f32 %v477, %v531
    %v567 = vadd.f32 %v478, %v535
    %v568 = vadd.f32 %v479, %v534
    %v569 = vadd.f32 %v480, %v538
    %v570 = vadd.f32 %v481, %v537
    %v571 = vmul.f32 %v173, %v450
    %v572 = vmul.f32 %v173, %v451
    %v573 = vmul.f32 %v173, %v452
    %v574 = vmul.f32 %v173, %v453
    %v575 = vmul.f32 %v173, %v454
    %v576 = vmul.f32 %v173, %v455
    %v577 = vmul.f32 %v173, %v456
    %v578 = vmul.f32 %v173, %v457
    %v579 = vmul.f32 %v173, %v458
    %v580 = vmul.f32 %v173, %v459
    %v581 = vmul.f32 %v173, %v460
    %v582 = vmul.f32 %v173, %v461
    %v583 = vmul.f32 %v173, %v462
    %v584 = vmul.f32 %v173, %v463
    %v585 = vmul.f32 %v173, %v464
    %v586 = vmul.f32 %v173, %v465
    %vm603 = vcmask 1045504
    %v604 = vrot.slane %v571, 2
    %v605 = vrot.slane %v572, 2
    %v606 = vsel %vm603, %v604, %v605
    %v607 = vrot.slane %v573, 2
    %v608 = vrot.slane %v574, 2
    %v609 = vsel %vm603, %v607, %v608
    %v610 = vrot.slane %v575, 2
    %v611 = vrot.slane %v576, 2
    %v612 = vsel %vm603, %v610, %v611
    %v613 = vrot.slane %v577, 2
    %v614 = vrot.slane %v578, 2
    %v615 = vsel %vm603, %v613, %v614
    %v616 = vrot.slane %v579, 2
    %v617 = vrot.slane %v580, 2
    %v618 = vsel %vm603, %v616, %v617
    %v619 = vrot.slane %v581, 2
    %v620 = vrot.slane %v582, 2
    %v621 = vsel %vm603, %v619, %v620
    %v622 = vrot.slane %v583, 2
    %v623 = vrot.slane %v584, 2
    %v624 = vsel %vm603, %v622, %v623
    %v625 = vrot.slane %v585, 2
    %v626 = vrot.slane %v586, 2
    %v627 = vsel %vm603, %v625, %v626
    %v644 = vadd.f32 %v555, %v606
    %v645 = vadd.f32 %v556, %v605
    %v646 = vadd.f32 %v557, %v609
    %v647 = vadd.f32 %v558, %v608
    %v648 = vadd.f32 %v559, %v612
    %v649 = vadd.f32 %v560, %v611
    %v650 = vadd.f32 %v561, %v615
    %v651 = vadd.f32 %v562, %v614
    %v652 = vadd.f32 %v563, %v618
    %v653 = vadd.f32 %v564, %v617
    %v654 = vadd.f32 %v565, %v621
    %v655 = vadd.f32 %v566, %v620
    %v656 = vadd.f32 %v567, %v624
    %v657 = vadd.f32 %v568, %v623
    %v658 = vadd.f32 %v569, %v627
    %v659 = vadd.f32 %v570, %v626
    %v660 = vmul.f32 %v271, %v450
    %v661 = vmul.f32 %v271, %v451
    %v662 = vmul.f32 %v271, %v452
    %v663 = vmul.f32 %v271, %v453
    %v664 = vmul.f32 %v271, %v454
    %v665 = vmul.f32 %v271, %v455
    %v666 = vmul.f32 %v271, %v456
    %v667 = vmul.f32 %v271, %v457
    %v668 = vmul.f32 %v271, %v458
    %v669 = vmul.f32 %v271, %v459
    %v670 = vmul.f32 %v271, %v460
    %v671 = vmul.f32 %v271, %v461
    %v672 = vmul.f32 %v271, %v462
    %v673 = vmul.f32 %v271, %v463
    %v674 = vmul.f32 %v271, %v464
    %v675 = vmul.f32 %v271, %v465
    %vm692 = vcmask 1044480
    %v693 = vrot.slane %v660, 3
    %v694 = vrot.slane %v661, 3
    %v695 = vsel %vm692, %v693, %v694
    %v696 = vrot.slane %v662, 3
    %v697 = vrot.slane %v663, 3
    %v698 = vsel %vm692, %v696, %v697
    %v699 = vrot.slane %v664, 3
    %v700 = vrot.slane %v665, 3
    %v701 = vsel %vm692, %v699, %v700
    %v702 = vrot.slane %v666, 3
    %v703 = vrot.slane %v667, 3
    %v704 = vsel %vm692, %v702, %v703
    %v705 = vrot.slane %v668, 3
    %v706 = vrot.slane %v669, 3
    %v707 = vsel %vm692, %v705, %v706
    %v708 = vrot.slane %v670, 3
    %v709 = vrot.slane %v671, 3
    %v710 = vsel %vm692, %v708, %v709
    %v711 = vrot.slane %v672, 3
    %v712 = vrot.slane %v673, 3
    %v713 = vsel %vm692, %v711, %v712
    %v714 = vrot.slane %v674, 3
    %v715 = vrot.slane %v675, 3
    %v716 = vsel %vm692, %v714, %v715
    %v733 = vadd.f32 %v644, %v695
    %v734 = vadd.f32 %v645, %v694
    %v735 = vadd.f32 %v646, %v698
    %v736 = vadd.f32 %v647, %v697
    %v737 = vadd.f32 %v648, %v701
    %v738 = vadd.f32 %v649, %v700
    %v739 = vadd.f32 %v650, %v704
    %v740 = vadd.f32 %v651, %v703
    %v741 = vadd.f32 %v652, %v707
    %v742 = vadd.f32 %v653, %v706
    %v743 = vadd.f32 %v654, %v710
    %v744 = vadd.f32 %v655, %v709
    %v745 = vadd.f32 %v656, %v713
    %v746 = vadd.f32 %v657, %v712
    %v747 = vadd.f32 %v658, %v716
    %v748 = vadd.f32 %v659, %v715
    %v749 = vmul.f32 %v369, %v450
    %v750 = vmul.f32 %v369, %v451
    %v751 = vmul.f32 %v369, %v452
    %v752 = vmul.f32 %v369, %v453
    %v753 = vmul.f32 %v369, %v454
    %v754 = vmul.f32 %v369, %v455
    %v755 = vmul.f32 %v369, %v456
    %v756 = vmul.f32 %v369, %v457
    %v757 = vmul.f32 %v369, %v458
    %v758 = vmul.f32 %v369, %v459
    %v759 = vmul.f32 %v369, %v460
    %v760 = vmul.f32 %v369, %v461
    %v761 = vmul.f32 %v369, %v462
    %v762 = vmul.f32 %v369, %v463
    %v763 = vmul.f32 %v369, %v464
    %v764 = vmul.f32 %v369, %v465
    %vm781 = vcmask 1043456
    %v782 = vrot.slane %v749, 4
    %v783 = vrot.slane %v750, 4
    %v784 = vsel %vm781, %v782, %v783
    %v785 = vrot.slane %v751, 4
    %v786 = vrot.slane %v752, 4
    %v787 = vsel %vm781, %v785, %v786
    %v788 = vrot.slane %v753, 4
    %v789 = vrot.slane %v754, 4
    %v790 = vsel %vm781, %v788, %v789
    %v791 = vrot.slane %v755, 4
    %v792 = vrot.slane %v756, 4
    %v793 = vsel %vm781, %v791, %v792
    %v794 = vrot.slane %v757, 4
    %v795 = vrot.slane %v758, 4
    %v796 = vsel %vm781, %v794, %v795
    %v797 = vrot.slane %v759, 4
    %v798 = vrot.slane %v760, 4
    %v799 = vsel %vm781, %v797, %v798
    %v800 = vrot.slane %v761, 4
    %v801 = vrot.slane %v762, 4
    %v802 = vsel %vm781, %v800, %v801
    %v803 = vrot.slane %v763, 4
    %v804 = vrot.slane %v764, 4
    %v805 = vsel %vm781, %v803, %v804
    %v822 = vadd.f32 %v733, %v784
    %v823 = vadd.f32 %v734, %v783
    %v824 = vadd.f32 %v735, %v787
    %v825 = vadd.f32 %v736, %v786
    %v826 = vadd.f32 %v737, %v790
    %v827 = vadd.f32 %v738, %v789
    %v828 = vadd.f32 %v739, %v793
    %v829 = vadd.f32 %v740, %v792
    %v830 = vadd.f32 %v741, %v796
    %v831 = vadd.f32 %v742, %v795
    %v832 = vadd.f32 %v743, %v799
    %v833 = vadd.f32 %v744, %v798
    %v834 = vadd.f32 %v745, %v802
    %v835 = vadd.f32 %v746, %v801
    %v836 = vadd.f32 %v747, %v805
    %v837 = vadd.f32 %v748, %v804
    %vm838 = vcmask 97280
    %839 = vst.msk [vmem:[%s2] sm:$0xff] %vm838, %v822
    %vm840 = vcmask 93184
    %841 = vst.msk [vmem:[%s2 + $0x8] sm:$0xf] %vm840, %v823
    %842 = vst.msk [vmem:[%s2 + $0x10] sm:$0xff] %vm838, %v824
    %843 = vst.msk [vmem:[%s2 + $0x18] sm:$0xf] %vm840, %v825
    %844 = vst.msk [vmem:[%s2 + $0x20] sm:$0xff] %vm838, %v826
    %845 = vst.msk [vmem:[%s2 + $0x28] sm:$0xf] %vm840, %v827
    %846 = vst.msk [vmem:[%s2 + $0x30] sm:$0xff] %vm838, %v828
    %847 = vst.msk [vmem:[%s2 + $0x38] sm:$0xf] %vm840, %v829
    %848 = vst.msk [vmem:[%s2 + $0x40] sm:$0xff] %vm838, %v830
    %849 = vst.msk [vmem:[%s2 + $0x48] sm:$0xf] %vm840, %v831
    %850 = vst.msk [vmem:[%s2 + $0x50] sm:$0xff] %vm838, %v832
    %851 = vst.msk [vmem:[%s2 + $0x58] sm:$0xf] %vm840, %v833
    %852 = vst.msk [vmem:[%s2 + $0x60] sm:$0xff] %vm838, %v834
    %853 = vst.msk [vmem:[%s2 + $0x68] sm:$0xf] %vm840, %v835
    %854 = vst.msk [vmem:[%s2 + $0x70] sm:$0xff] %vm838, %v836
    %855 = vst.msk [vmem:[%s2 + $0x78] sm:$0xf] %vm840, %v837
    // Predicated region
    $region18: #{tpu_custom_call.1} parent=1 // pred_check
      _
    $region19: #{tpu_custom_call.1} parent=1 // pred_check_branch
      %857 = sbr.rel (0) target = $region21
    $region20: #{tpu_custom_call.1} parent=1 // pred_region
      _
    $region21: #{tpu_custom_call.1} parent=1 // pred_fallthru
      _
    // Predicated region
    $region22: #{tpu_custom_call.1} parent=1 // pred_check
      _
    $region23: #{tpu_custom_call.1} parent=1 // pred_check_branch
      %859 = sbr.rel (0) target = $region25
    $region24: #{tpu_custom_call.1} parent=1 // pred_region
      _
    $region25: #{tpu_custom_call.1} parent=1 // pred_fallthru
      _
    %860 = vsyncpa [#allocation3], 1
    %861 = vsyncpa [#allocation4], 1

</llo_original>
